<compile_context>
chip_gen: v7x
topology: tpu7x:2x2x1
jax: 0.10.0
libtpu: 0.0.40
codegen_flags: <defaults>
</compile_context>

<pallas_src>
import functools

import jax
import jax.numpy as jnp
from jax import lax
from jax.experimental import pallas as pl
from jax.experimental.pallas import tpu as pltpu


def _round_up(x, m):
    return ((x + m - 1) // m) * m


def _cyclic_loss_kernel(i_idx_ref, j_idx_ref, l_ref, r_ref, out_ref, acc_ref,
                        *, scale):
    s = pl.program_id(0)

    @pl.when(s == 0)
    def _init():
        acc_ref[...] = jnp.zeros_like(acc_ref)

    # One MXU push per tile pair: L_i @ R_j^T == v_i v_j^T - a_i a_j^T
    # (contract the last dim of both operands -> no transposed copy / XLU).
    d = lax.dot_general(l_ref[...], r_ref[...], (((1,), (1,)), ((), ())),
                        preferred_element_type=jnp.float32)

    # Off-diagonal tile pairs stand in for both (i,j) and (j,i): weight 2.
    ii = i_idx_ref[s]
    jj = j_idx_ref[s]
    w = jnp.where(ii == jj, jnp.float32(1.0), jnp.float32(2.0))
    acc_ref[...] += w * (d * d)          # pure VPU; no per-step cross-lane reduce

    @pl.when(s == pl.num_programs(0) - 1)
    def _finalize():
        # mean over N*N, then * N * weight  ==  sum * (weight / N)
        out_ref[0, 0] = jnp.sum(acc_ref[...]) * scale


def cyclic_loss(visual_feature, audio_feature, inmodel_weight=1.0,
                block_n=None, use_bf16_matmul=False):
    """Pallas implementation of CyclicLoss.forward. Inputs: [N, D] each."""
    assert visual_feature.shape == audio_feature.shape
    assert visual_feature.ndim == 2
    n, d = visual_feature.shape

    v = visual_feature.astype(jnp.float32)
    a = audio_feature.astype(jnp.float32)

    # Hoisted normalization (O(N*D), once). 1/max(||x||, eps) ==
    # rsqrt(max(sumsq, eps^2)) with eps = 1e-12 (matches F.normalize).
    eps = jnp.float32(1e-12)
    v = v * lax.rsqrt(jnp.maximum(jnp.sum(v * v, axis=1, keepdims=True), eps * eps))
    a = a * lax.rsqrt(jnp.maximum(jnp.sum(a * a, axis=1, keepdims=True), eps * eps))

    # Algebraic fusion: L @ R^T == v v^T - a a^T. Padded rows/cols are zero and
    # contribute exactly 0 to the accumulated sum.
    k_pad = _round_up(2 * d, 128)
    in_dtype = jnp.bfloat16 if use_bf16_matmul else jnp.float32
    elem_bytes = 2 if use_bf16_matmul else 4

    def working_set(t):
        # L/R blocks double-buffered + the (t, t) f32 accumulator.
        return 2 * 2 * t * k_pad * elem_bytes + t * t * 4

    if block_n is None:
        tile = next((t for t in (512, 256, 128) if working_set(t) <= (32 << 20)),
                    128)
    else:
        assert block_n % 128 == 0
        tile = block_n
    tile = min(tile, _round_up(n, 128))      # lane-aligned Gram tiles
    n_pad = _round_up(n, tile)

    lmat = jnp.pad(jnp.concatenate([v, a], axis=1).astype(in_dtype),
                   ((0, n_pad - n), (0, k_pad - 2 * d)))
    rmat = jnp.pad(jnp.concatenate([v, -a], axis=1).astype(in_dtype),
                   ((0, n_pad - n), (0, k_pad - 2 * d)))

    # Triangular (i <= j) tile-pair schedule; the row block stays resident for
    # consecutive steps (same block index -> Pallas skips the re-fetch DMA).
    n_tiles = n_pad // tile
    pairs = [(i, j) for i in range(n_tiles) for j in range(i, n_tiles)]
    i_idx = jnp.asarray([p[0] for p in pairs], dtype=jnp.int32)
    j_idx = jnp.asarray([p[1] for p in pairs], dtype=jnp.int32)
    grid = (len(pairs),)

    scale = float(inmodel_weight) / float(n)  # fold weight & 1/N into the kernel
    kernel = functools.partial(_cyclic_loss_kernel, scale=scale)

    # Explicit scoped-VMEM budget: override v5e's 16 MiB default, but cap at
    # 48 MiB to leave headroom on v7x's 64 MiB physical VMEM.
    vmem_limit = int(min(max(working_set(tile) + (8 << 20), 24 << 20), 48 << 20))

    out = pl.pallas_call(
        kernel,
        out_shape=jax.ShapeDtypeStruct((1, 1), jnp.float32),
        grid_spec=pltpu.PrefetchScalarGridSpec(
            num_scalar_prefetch=2,
            grid=grid,
            in_specs=[
                pl.BlockSpec((tile, k_pad), lambda s, ii, jj: (ii[s], 0)),  # row blk
                pl.BlockSpec((tile, k_pad), lambda s, ii, jj: (jj[s], 0)),  # col blk
            ],
            out_specs=pl.BlockSpec(memory_space=pltpu.SMEM),
            scratch_shapes=[pltpu.VMEM((tile, tile), jnp.float32)],
        ),
        compiler_params=pltpu.CompilerParams(
            dimension_semantics=("arbitrary",),
            vmem_limit_bytes=vmem_limit,
        ),
    )(i_idx, j_idx, lmat, rmat)
    return out[0, 0]


def _reference(visual, audio, inmodel_weight=1.0):
    # Pure-JAX reference mirroring the PyTorch module (full-precision matmuls).
    eps = 1e-12
    v = visual / jnp.maximum(jnp.linalg.norm(visual, axis=1, keepdims=True), eps)
    a = audio / jnp.maximum(jnp.linalg.norm(audio, axis=1, keepdims=True), eps)
    hp = jax.lax.Precision.HIGHEST
    vl = jnp.matmul(v, v.T, precision=hp)
    al = jnp.matmul(a, a.T, precision=hp)
    return inmodel_weight * jnp.mean((vl - al) ** 2) * visual.shape[0]


if __name__ == "__main__":
    key = jax.random.PRNGKey(0)
    k1, k2, k3, k4 = jax.random.split(key, 4)

    # Case 1: tiny shapes (single tile pair; K padded 64 -> 128, N padded 8 -> 128).
    n1, d1 = 8, 32
    v1 = jax.random.normal(k1, (n1, d1), dtype=jnp.float32)
    a1 = jax.random.normal(k2, (n1, d1), dtype=jnp.float32)
    out1 = jax.block_until_ready(cyclic_loss(v1, a1, inmodel_weight=1.0))
    ref1 = _reference(v1, a1, inmodel_weight=1.0)
    assert jnp.allclose(out1, ref1, rtol=1e-4, atol=1e-5), (out1, ref1)

    # Case 2: exercises the triangular multi-tile path (2 row tiles -> 3 pairs,
    # off-diagonal weight 2), K padding 192 -> 256, fused weight scaling.
    n2, d2 = 256, 96
    v2 = jax.random.normal(k3, (n2, d2), dtype=jnp.float32)
    a2 = jax.random.normal(k4, (n2, d2), dtype=jnp.float32)
    out2 = jax.block_until_ready(
        cyclic_loss(v2, a2, inmodel_weight=0.5, block_n=128))
    ref2 = _reference(v2, a2, inmodel_weight=0.5)
    assert jnp.allclose(out2, ref2, rtol=1e-4, atol=1e-5), (out2, ref2)

    # Case 3: auto tile selection path (block_n=None).
    out3 = jax.block_until_ready(cyclic_loss(v2, a2, inmodel_weight=1.0))
    ref3 = _reference(v2, a2, inmodel_weight=1.0)
    assert jnp.allclose(out3, ref3, rtol=1e-4, atol=1e-5), (out3, ref3)

    print("KERNEL_OK")
</pallas_src>

<mosaic_0001>
module attributes {stable_mosaic.version = 11 : i64} {
  func.func @_cyclic_loss_kernel(%arg0: i32, %arg1: memref<1xi32, #tpu.memory_space<smem>>, %arg2: memref<1xi32, #tpu.memory_space<smem>>, %arg3: memref<128x128xf32, #tpu.memory_space<vmem>>, %arg4: memref<128x128xf32, #tpu.memory_space<vmem>>, %arg5: memref<1x1xf32, #tpu.memory_space<smem>>, %arg6: memref<128x128xf32, #tpu.memory_space<vmem>>) attributes {dimension_semantics = [#tpu.dimension_semantics<arbitrary>], iteration_bounds = array<i64: 1>, scalar_prefetch = 2 : i64, scratch_operands = 1 : i64, tpu.core_type = #tpu.core_type<tc>, window_params = [{transform_indices = @transform_0, window_bounds = array<i64: 128, 128>}, {transform_indices = @transform_1, window_bounds = array<i64: 128, 128>}, {transform_indices = @transform_2, window_bounds = array<i64: 1, 1>}]} {
    %c0_i32 = arith.constant 0 : i32
    %0 = arith.cmpi eq, %arg0, %c0_i32 : i32
    %1 = arith.extui %0 : i1 to i32
    %c0_i32_0 = arith.constant 0 : i32
    %2 = arith.cmpi ne, %1, %c0_i32_0 : i32
    scf.if %2 {
      %cst_12 = arith.constant 0.000000e+00 : f32
      %21 = vector.broadcast %cst_12 : f32 to vector<128x128xf32>
      %c0_13 = arith.constant 0 : index
      %c0_14 = arith.constant 0 : index
      %22 = vector.load %arg6[%c0_13, %c0_14] : memref<128x128xf32, #tpu.memory_space<vmem>>, vector<128x128xf32>
      tpu.vector_store %arg6[%c0_13, %c0_14], %21 {strides = array<i32>} : memref<128x128xf32, #tpu.memory_space<vmem>>, vector<128x128xf32>,
    } else {
    }
    %c0 = arith.constant 0 : index
    %c0_1 = arith.constant 0 : index
    %3 = vector.load %arg3[%c0, %c0_1] : memref<128x128xf32, #tpu.memory_space<vmem>>, vector<128x128xf32>
    %c0_2 = arith.constant 0 : index
    %c0_3 = arith.constant 0 : index
    %4 = vector.load %arg4[%c0_2, %c0_3] : memref<128x128xf32, #tpu.memory_space<vmem>>, vector<128x128xf32>
    %cst = arith.constant dense<0.000000e+00> : vector<128x128xf32>
    %5 = tpu.matmul %3, %4, %cst {dimension_numbers = #tpu.dot_dimension_numbers<[1], [1], [0], [0], [0, 0, 1, 0], [], []>} : vector<128x128xf32>, vector<128x128xf32>, vector<128x128xf32> -> vector<128x128xf32>
    %6 = arith.index_cast %arg0 : i32 to index
    %7 = memref.load %arg1[%6] : memref<1xi32, #tpu.memory_space<smem>>
    %8 = arith.index_cast %arg0 : i32 to index
    %9 = memref.load %arg2[%8] : memref<1xi32, #tpu.memory_space<smem>>
    %10 = arith.cmpi eq, %7, %9 : i32
    %cst_4 = arith.constant 1.000000e+00 : f32
    %cst_5 = arith.constant 2.000000e+00 : f32
    %11 = arith.select %10, %cst_4, %cst_5 : f32
    %c0_6 = arith.constant 0 : index
    %c0_7 = arith.constant 0 : index
    %12 = vector.load %arg6[%c0_6, %c0_7] : memref<128x128xf32, #tpu.memory_space<vmem>>, vector<128x128xf32>
    %13 = arith.mulf %5, %5 : vector<128x128xf32>
    %14 = vector.broadcast %11 : f32 to vector<128x128xf32>
    %15 = arith.mulf %14, %13 : vector<128x128xf32>
    %16 = arith.addf %12, %15 : vector<128x128xf32>
    %c0_8 = arith.constant 0 : index
    %c0_9 = arith.constant 0 : index
    %17 = vector.load %arg6[%c0_8, %c0_9] : memref<128x128xf32, #tpu.memory_space<vmem>>, vector<128x128xf32>
    tpu.vector_store %arg6[%c0_8, %c0_9], %16 {strides = array<i32>} : memref<128x128xf32, #tpu.memory_space<vmem>>, vector<128x128xf32>,
    %c0_i32_10 = arith.constant 0 : i32
    %18 = arith.cmpi eq, %arg0, %c0_i32_10 : i32
    %19 = arith.extui %18 : i1 to i32
    %c0_i32_11 = arith.constant 0 : i32
    %20 = arith.cmpi ne, %19, %c0_i32_11 : i32
    scf.if %20 {
      %c0_12 = arith.constant 0 : index
      %c0_13 = arith.constant 0 : index
      %21 = vector.load %arg6[%c0_12, %c0_13] : memref<128x128xf32, #tpu.memory_space<vmem>>, vector<128x128xf32>
      %22 = vector.shape_cast %21 : vector<128x128xf32> to vector<1x128x128xf32>
      %cst_14 = arith.constant dense<0.000000e+00> : vector<1xf32>
      %23 = vector.multi_reduction <add>, %22, %cst_14 [1, 2] : vector<1x128x128xf32> to vector<1xf32>
      %24 = vector.shape_cast %23 : vector<1xf32> to vector<1x1x1xf32>
      %25 = vector.extract %24[0, 0, 0] : f32 from vector<1x1x1xf32>
      %cst_15 = arith.constant 1.250000e-01 : f32
      %26 = arith.mulf %25, %cst_15 : f32
      %c0_16 = arith.constant 0 : index
      %c0_17 = arith.constant 0 : index
      %27 = memref.load %arg5[%c0_16, %c0_17] : memref<1x1xf32, #tpu.memory_space<smem>>
      memref.store %26, %arg5[%c0_16, %c0_17] : memref<1x1xf32, #tpu.memory_space<smem>>
    } else {
    }
    return
  }
  func.func @transform_0(%arg0: i32, %arg1: memref<1xi32, #tpu.memory_space<smem>>, %arg2: memref<1xi32, #tpu.memory_space<smem>>) -> (i32, i32) {
    %0 = arith.index_cast %arg0 : i32 to index
    %1 = memref.load %arg1[%0] : memref<1xi32, #tpu.memory_space<smem>>
    %c0_i32 = arith.constant 0 : i32
    %c0_i32_0 = arith.constant 0 : i32
    return %1, %c0_i32 : i32, i32
  }
  func.func @transform_1(%arg0: i32, %arg1: memref<1xi32, #tpu.memory_space<smem>>, %arg2: memref<1xi32, #tpu.memory_space<smem>>) -> (i32, i32) {
    %0 = arith.index_cast %arg0 : i32 to index
    %1 = memref.load %arg2[%0] : memref<1xi32, #tpu.memory_space<smem>>
    %c0_i32 = arith.constant 0 : i32
    %c0_i32_0 = arith.constant 0 : i32
    return %1, %c0_i32 : i32, i32
  }
  func.func @transform_2(%arg0: i32, %arg1: memref<1xi32, #tpu.memory_space<smem>>, %arg2: memref<1xi32, #tpu.memory_space<smem>>) -> (i32, i32) {
    %c0_i32 = arith.constant 0 : i32
    %c0_i32_0 = arith.constant 0 : i32
    %c0_i32_1 = arith.constant 0 : i32
    return %c0_i32, %c0_i32_0 : i32, i32
  }
}

</mosaic_0001>

<llo_original>
// kernel: tpu_custom_call.1
$region0: #{tpu_custom_call.1}
  #allocation0 [shape = 'u32[]', space=smem, size = 0x4, offset = 0x4, fixed_abs, tag = 'smem constant byte address 0x4 - core index']
  #allocation1 [shape = 'u32[144,128]{1,0:T(1,128)}', space=vmem, size = 0x12000, scoped, tag = 'internal scratch']
  #allocation2 [shape = 'f32[128,128]{1,0:T(8,128)}', space=vmem, size = 0x10000, scoped, tag = 'scratch operand']
  #allocation3 [shape = 's32[1]{0}', space=sflag, size = 0x4, scoped, tag = 'scoped memory for tpu_custom_call.1']
  #allocation4 [shape = 's32[1]{0:T(128)S(6)}', space=smem, size = 0x200, scoped, tag = 'prefetched SMEM operand 0']
  #allocation5 [shape = 's32[1]{0:T(128)S(6)}', space=smem, size = 0x200, scoped, tag = 'prefetched SMEM operand 1']
  %s0 = inlined_call_operand.<no memory space> [shape: s32[1], index: 0, kind: input, shape index: {}]
  %s1 = inlined_call_operand.<no memory space> [shape: s32[1], index: 1, kind: input, shape index: {}]
  %s2 = inlined_call_operand.hbm [shape: f32[128,128], index: 2, kind: input, shape index: {}]
  %s3 = inlined_call_operand.hbm [shape: f32[128,128], index: 3, kind: input, shape index: {}]
  %s4 = inlined_call_operand.hbm [shape: f32[1,1], index: 4, kind: output, shape index: {}]
  %s5 = sld [smem:[#allocation0]]
  $region34: #{tpu_custom_call.1} parent=0
    _
  %s7 = ssub.s32 1, %s5
  %s8 = scalar_select 0, %s7, %s5
  %9 = sst [smem:[#allocation4]] %s0
  %10 = sst [smem:[#allocation5]] %s1
  $region1: #{tpu_custom_call.1} parent=0
    #allocation6 [shape = 'u8[65536]{0}', space=vmem, size = 0x10000, scoped, tag = 'input window, operand 2, single buffered']
    #allocation7 [shape = 's32[1]{0}', space=sflag, size = 0x4, scoped, tag = 'scoped memory for tpu_custom_call.1']
    #allocation8 [shape = 's32[1]{0}', space=sflag, size = 0x4, scoped, tag = 'scoped memory for tpu_custom_call.1']
    #allocation9 [shape = 'u8[65536]{0}', space=vmem, size = 0x10000, scoped, tag = 'input window, operand 3, single buffered']
    #allocation10 [shape = 's32[1]{0}', space=sflag, size = 0x4, scoped, tag = 'scoped memory for tpu_custom_call.1']
    #allocation11 [shape = 'u8[512]{0}', space=smem, size = 0x200, scoped, tag = 'output window, operand 0, single buffered']
    %11 = vsyncpa [#allocation7], 0
    %12 = vsyncpa [#allocation10], 0
    %13 = vsyncpa [#allocation8], 0
    // Predicated region
    $region2: #{tpu_custom_call.1} parent=1 // pred_check
      _
    $region3: #{tpu_custom_call.1} parent=1 // pred_check_branch
      %15 = sbr.rel (0) target = $region5
    $region4: #{tpu_custom_call.1} parent=1 // pred_region
      %s16 = sld [smem:[#allocation4]]
      %s17 = smul.u32 16, %s16
      %s19 = ssub.s32 2048, 2048
      %20 = vsyncadd [#allocation7], %s19
      %s21 = smul.addr %s17, 128
      %s22 = scalar_lea.hbm %s2, %s21
      %s23 = sshll.u32 [#allocation6], 4
      %s24 = int_to_ptr.vmem [resolvable:$true] %s23
      %29 = dma.hbm_to_vmem [thread:$0]  %s22, 2048, %s24, [#allocation7], 128, 128, 8
    $region5: #{tpu_custom_call.1} parent=1 // pred_fallthru
      _
    // Predicated region
    $region6: #{tpu_custom_call.1} parent=1 // pred_check
      _
    $region7: #{tpu_custom_call.1} parent=1 // pred_check_branch
      %31 = sbr.rel (0) target = $region9
    $region8: #{tpu_custom_call.1} parent=1 // pred_region
      %s32 = sld [smem:[#allocation5]]
      %s33 = smul.u32 16, %s32
      %s35 = ssub.s32 2048, 2048
      %36 = vsyncadd [#allocation10], %s35
      %s37 = smul.addr %s33, 128
      %s38 = scalar_lea.hbm %s3, %s37
      %s39 = sshll.u32 [#allocation9], 4
      %s40 = int_to_ptr.vmem [resolvable:$true] %s39
      %45 = dma.hbm_to_vmem [thread:$0]  %s38, 2048, %s40, [#allocation10], 128, 128, 8
    $region9: #{tpu_custom_call.1} parent=1 // pred_fallthru
      _
    // Predicated region
    $region10: #{tpu_custom_call.1} parent=1 // pred_check
      _
    $region11: #{tpu_custom_call.1} parent=1 // pred_check_branch
      %47 = sbr.rel (0) target = $region13
    $region12: #{tpu_custom_call.1} parent=1 // pred_region
      %48 = dma.done [#allocation7], 2048
    $region13: #{tpu_custom_call.1} parent=1 // pred_fallthru
      _
    // Predicated region
    $region14: #{tpu_custom_call.1} parent=1 // pred_check
      _
    $region15: #{tpu_custom_call.1} parent=1 // pred_check_branch
      %50 = sbr.rel (0) target = $region17
    $region16: #{tpu_custom_call.1} parent=1 // pred_region
      %51 = dma.done [#allocation10], 2048
    $region17: #{tpu_custom_call.1} parent=1 // pred_fallthru
      _
    %s52 = sld [smem:[#allocation4]]
    %s53 = smul.u32 16, %s52
    %s54 = sld [smem:[#allocation5]]
    %s55 = smul.u32 16, %s54
    %p56 = scmp.eq.s32.totalorder 0, 0
    // Predicated region
    $region18: #{tpu_custom_call.1} parent=1 // pred_check
      %p57 = pneg %p56
    $region19: #{tpu_custom_call.1} parent=1 // pred_check_branch
      %59 = sbr.rel (%p57) target = $region21
    $region20: #{tpu_custom_call.1} parent=1 // pred_region
      %60 = vst [vmem:[#allocation2] sm:$0xff] 0.0
      %61 = vst [vmem:[#allocation2 + $0x8] sm:$0xff] 0.0
      %62 = vst [vmem:[#allocation2 + $0x10] sm:$0xff] 0.0
      %63 = vst [vmem:[#allocation2 + $0x18] sm:$0xff] 0.0
      %64 = vst [vmem:[#allocation2 + $0x20] sm:$0xff] 0.0
      %65 = vst [vmem:[#allocation2 + $0x28] sm:$0xff] 0.0
      %66 = vst [vmem:[#allocation2 + $0x30] sm:$0xff] 0.0
      %67 = vst [vmem:[#allocation2 + $0x38] sm:$0xff] 0.0
      %68 = vst [vmem:[#allocation2 + $0x40] sm:$0xff] 0.0
      %69 = vst [vmem:[#allocation2 + $0x48] sm:$0xff] 0.0
      %70 = vst [vmem:[#allocation2 + $0x50] sm:$0xff] 0.0
      %71 = vst [vmem:[#allocation2 + $0x58] sm:$0xff] 0.0
      %72 = vst [vmem:[#allocation2 + $0x60] sm:$0xff] 0.0
      %73 = vst [vmem:[#allocation2 + $0x68] sm:$0xff] 0.0
      %74 = vst [vmem:[#allocation2 + $0x70] sm:$0xff] 0.0
      %75 = vst [vmem:[#allocation2 + $0x78] sm:$0xff] 0.0
    $region21: #{tpu_custom_call.1} parent=1 // pred_fallthru
      _
    %v76 = vld [vmem:[#allocation6] sm:$0xff]
    %v77 = vld [vmem:[#allocation6 + $0x8] sm:$0xff]
    %v78 = vld [vmem:[#allocation6 + $0x10] sm:$0xff]
    %v79 = vld [vmem:[#allocation6 + $0x18] sm:$0xff]
    %v80 = vld [vmem:[#allocation6 + $0x20] sm:$0xff]
    %v81 = vld [vmem:[#allocation6 + $0x28] sm:$0xff]
    %v82 = vld [vmem:[#allocation6 + $0x30] sm:$0xff]
    %v83 = vld [vmem:[#allocation6 + $0x38] sm:$0xff]
    %v84 = vld [vmem:[#allocation6 + $0x40] sm:$0xff]
    %v85 = vld [vmem:[#allocation6 + $0x48] sm:$0xff]
    %v86 = vld [vmem:[#allocation6 + $0x50] sm:$0xff]
    %v87 = vld [vmem:[#allocation6 + $0x58] sm:$0xff]
    %v88 = vld [vmem:[#allocation6 + $0x60] sm:$0xff]
    %v89 = vld [vmem:[#allocation6 + $0x68] sm:$0xff]
    %v90 = vld [vmem:[#allocation6 + $0x70] sm:$0xff]
    %v91 = vld [vmem:[#allocation6 + $0x78] sm:$0xff]
    %v92 = vld [vmem:[#allocation9] sm:$0xff]
    %v93 = vld [vmem:[#allocation9 + $0x8] sm:$0xff]
    %v94 = vld [vmem:[#allocation9 + $0x10] sm:$0xff]
    %v95 = vld [vmem:[#allocation9 + $0x18] sm:$0xff]
    %v96 = vld [vmem:[#allocation9 + $0x20] sm:$0xff]
    %v97 = vld [vmem:[#allocation9 + $0x28] sm:$0xff]
    %v98 = vld [vmem:[#allocation9 + $0x30] sm:$0xff]
    %v99 = vld [vmem:[#allocation9 + $0x38] sm:$0xff]
    %v100 = vld [vmem:[#allocation9 + $0x40] sm:$0xff]
    %v101 = vld [vmem:[#allocation9 + $0x48] sm:$0xff]
    %v102 = vld [vmem:[#allocation9 + $0x50] sm:$0xff]
    %v103 = vld [vmem:[#allocation9 + $0x58] sm:$0xff]
    %v104 = vld [vmem:[#allocation9 + $0x60] sm:$0xff]
    %v105 = vld [vmem:[#allocation9 + $0x68] sm:$0xff]
    %v106 = vld [vmem:[#allocation9 + $0x70] sm:$0xff]
    %v107 = vld [vmem:[#allocation9 + $0x78] sm:$0xff]
    %108 = vmatprep.subr.mxu0 0.0
    %109 = vmatpush1.xpose.msra.mxu0 %v92
    %110 = vmatprep.subr.mxu0 0.0
    %111 = vmatpush1.xpose.msra.mxu0 %v93
    %112 = vmatprep.subr.mxu0 0.0
    %113 = vmatpush1.xpose.msra.mxu0 %v94
    %114 = vmatprep.subr.mxu0 0.0
    %115 = vmatpush1.xpose.msra.mxu0 %v95
    %116 = vmatprep.subr.mxu0 0.0
    %117 = vmatpush1.xpose.msra.mxu0 %v96
    %118 = vmatprep.subr.mxu0 0.0
    %119 = vmatpush1.xpose.msra.mxu0 %v97
    %120 = vmatprep.subr.mxu0 0.0
    %121 = vmatpush1.xpose.msra.mxu0 %v98
    %122 = vmatprep.subr.mxu0 0.0
    %123 = vmatpush1.xpose.msra.mxu0 %v99
    %124 = vmatprep.subr.mxu0 0.0
    %125 = vmatpush1.xpose.msra.mxu0 %v100
    %126 = vmatprep.subr.mxu0 0.0
    %127 = vmatpush1.xpose.msra.mxu0 %v101
    %128 = vmatprep.subr.mxu0 0.0
    %129 = vmatpush1.xpose.msra.mxu0 %v102
    %130 = vmatprep.subr.mxu0 0.0
    %131 = vmatpush1.xpose.msra.mxu0 %v103
    %132 = vmatprep.subr.mxu0 0.0
    %133 = vmatpush1.xpose.msra.mxu0 %v104
    %134 = vmatprep.subr.mxu0 0.0
    %135 = vmatpush1.xpose.msra.mxu0 %v105
    %136 = vmatprep.subr.mxu0 0.0
    %137 = vmatpush1.xpose.msra.mxu0 %v106
    %138 = vmatprep.subr.mxu0 0.0
    %139 = vmatpush1.xpose.msra.mxu0 %v107
    %140 = vmatprep.subr.mxu0 0.0
    %141 = vmatpush1.xpose.msra.mxu0 0.0
    %142 = vmatprep.subr.mxu0 0.0
    %143 = vmatpush1.xpose.msra.mxu0 0.0
    %144 = vmatprep.subr.mxu0 0.0
    %145 = vmatpush1.xpose.msra.mxu0 0.0
    %146 = vmatprep.subr.mxu0 0.0
    %147 = vmatpush1.xpose.msra.mxu0 0.0
    %148 = vmatprep.subr.mxu0 0.0
    %149 = vmatpush1.xpose.msra.mxu0 0.0
    %150 = vmatprep.subr.mxu0 0.0
    %151 = vmatpush1.xpose.msra.mxu0 0.0
    %152 = vmatprep.subr.mxu0 0.0
    %153 = vmatpush1.xpose.msra.mxu0 0.0
    %154 = vmatprep.subr.mxu0 0.0
    %155 = vmatpush1.xpose.msra.mxu0 0.0
    %156 = vmatprep.subr.mxu0 0.0
    %157 = vmatpush1.xpose.msra.mxu0 0.0
    %158 = vmatprep.subr.mxu0 0.0
    %159 = vmatpush1.xpose.msra.mxu0 0.0
    %160 = vmatprep.subr.mxu0 0.0
    %161 = vmatpush1.xpose.msra.mxu0 0.0
    %162 = vmatprep.subr.mxu0 0.0
    %163 = vmatpush1.xpose.msra.mxu0 0.0
    %164 = vmatprep.subr.mxu0 0.0
    %165 = vmatpush1.xpose.msra.mxu0 0.0
    %166 = vmatprep.subr.mxu0 0.0
    %167 = vmatpush1.xpose.msra.mxu0 0.0
    %168 = vmatprep.subr.mxu0 0.0
    %169 = vmatpush1.xpose.msra.mxu0 0.0
    %170 = vmatprep.subr.mxu0 0.0
    %171 = vmatpush1.xpose.msra.mxu0 0.0
    %172 = vmatprep.mubr.f32.mxu0 0.0
    %173 = vmatmul.mubr.f32.gmra.mrb[0].mxu0 %v76
    %v174 = vpop.f32.mrb[0].mxu0
    %v175 = vadd.f32 0.0, %v174
    %v176 = vpop.f32.mrb[0].mxu0
    %177 = vmatprep.mubr.f32.mxu0 0.0
    %178 = vmatmul.mubr.f32.gmra.mrb[0].mxu0 %v77
    %v179 = vpop.f32.mrb[0].mxu0
    %v180 = vadd.f32 0.0, %v179
    %v181 = vpop.f32.mrb[0].mxu0
    %182 = vmatprep.mubr.f32.mxu0 0.0
    %183 = vmatmul.mubr.f32.gmra.mrb[0].mxu0 %v78
    %v184 = vpop.f32.mrb[0].mxu0
    %v185 = vadd.f32 0.0, %v184
    %v186 = vpop.f32.mrb[0].mxu0
    %187 = vmatprep.mubr.f32.mxu0 0.0
    %188 = vmatmul.mubr.f32.gmra.mrb[0].mxu0 %v79
    %v189 = vpop.f32.mrb[0].mxu0
    %v190 = vadd.f32 0.0, %v189
    %v191 = vpop.f32.mrb[0].mxu0
    %192 = vmatprep.mubr.f32.mxu0 0.0
    %193 = vmatmul.mubr.f32.gmra.mrb[0].mxu0 %v80
    %v194 = vpop.f32.mrb[0].mxu0
    %v195 = vadd.f32 0.0, %v194
    %v196 = vpop.f32.mrb[0].mxu0
    %197 = vmatprep.mubr.f32.mxu0 0.0
    %198 = vmatmul.mubr.f32.gmra.mrb[0].mxu0 %v81
    %v199 = vpop.f32.mrb[0].mxu0
    %v200 = vadd.f32 0.0, %v199
    %v201 = vpop.f32.mrb[0].mxu0
    %202 = vmatprep.mubr.f32.mxu0 0.0
    %203 = vmatmul.mubr.f32.gmra.mrb[0].mxu0 %v82
    %v204 = vpop.f32.mrb[0].mxu0
    %v205 = vadd.f32 0.0, %v204
    %v206 = vpop.f32.mrb[0].mxu0
    %207 = vmatprep.mubr.f32.mxu0 0.0
    %208 = vmatmul.mubr.f32.gmra.mrb[0].mxu0 %v83
    %v209 = vpop.f32.mrb[0].mxu0
    %v210 = vadd.f32 0.0, %v209
    %v211 = vpop.f32.mrb[0].mxu0
    %212 = vmatprep.mubr.f32.mxu0 0.0
    %213 = vmatmul.mubr.f32.gmra.mrb[0].mxu0 %v84
    %v214 = vpop.f32.mrb[0].mxu0
    %v215 = vadd.f32 0.0, %v214
    %v216 = vpop.f32.mrb[0].mxu0
    %217 = vmatprep.mubr.f32.mxu0 0.0
    %218 = vmatmul.mubr.f32.gmra.mrb[0].mxu0 %v85
    %v219 = vpop.f32.mrb[0].mxu0
    %v220 = vadd.f32 0.0, %v219
    %v221 = vpop.f32.mrb[0].mxu0
    %222 = vmatprep.mubr.f32.mxu0 0.0
    %223 = vmatmul.mubr.f32.gmra.mrb[0].mxu0 %v86
    %v224 = vpop.f32.mrb[0].mxu0
    %v225 = vadd.f32 0.0, %v224
    %v226 = vpop.f32.mrb[0].mxu0
    %227 = vmatprep.mubr.f32.mxu0 0.0
    %228 = vmatmul.mubr.f32.gmra.mrb[0].mxu0 %v87
    %v229 = vpop.f32.mrb[0].mxu0
    %v230 = vadd.f32 0.0, %v229
    %v231 = vpop.f32.mrb[0].mxu0
    %232 = vmatprep.mubr.f32.mxu0 0.0
    %233 = vmatmul.mubr.f32.gmra.mrb[0].mxu0 %v88
    %v234 = vpop.f32.mrb[0].mxu0
    %v235 = vadd.f32 0.0, %v234
    %v236 = vpop.f32.mrb[0].mxu0
    %237 = vmatprep.mubr.f32.mxu0 0.0
    %238 = vmatmul.mubr.f32.gmra.mrb[0].mxu0 %v89
    %v239 = vpop.f32.mrb[0].mxu0
    %v240 = vadd.f32 0.0, %v239
    %v241 = vpop.f32.mrb[0].mxu0
    %242 = vmatprep.mubr.f32.mxu0 0.0
    %243 = vmatmul.mubr.f32.gmra.mrb[0].mxu0 %v90
    %v244 = vpop.f32.mrb[0].mxu0
    %v245 = vadd.f32 0.0, %v244
    %v246 = vpop.f32.mrb[0].mxu0
    %247 = vmatprep.mubr.f32.mxu0 0.0
    %248 = vmatmul.mubr.f32.gmra.mrb[0].mxu0 %v91
    %v249 = vpop.f32.mrb[0].mxu0
    %v250 = vadd.f32 0.0, %v249
    %v251 = vpop.f32.mrb[0].mxu0
    %252 = vdwg.mxu0
    %s253 = sld [smem:[#allocation4]]
    %s254 = sld [smem:[#allocation5]]
    %p255 = scmp.eq.s32.totalorder %s253, %s254
    %s256 = scalar_select %p255, 1.0, 2.0
    %v257 = vld [vmem:[#allocation2] sm:$0xff]
    %v258 = vld [vmem:[#allocation2 + $0x8] sm:$0xff]
    %v259 = vld [vmem:[#allocation2 + $0x10] sm:$0xff]
    %v260 = vld [vmem:[#allocation2 + $0x18] sm:$0xff]
    %v261 = vld [vmem:[#allocation2 + $0x20] sm:$0xff]
    %v262 = vld [vmem:[#allocation2 + $0x28] sm:$0xff]
    %v263 = vld [vmem:[#allocation2 + $0x30] sm:$0xff]
    %v264 = vld [vmem:[#allocation2 + $0x38] sm:$0xff]
    %v265 = vld [vmem:[#allocation2 + $0x40] sm:$0xff]
    %v266 = vld [vmem:[#allocation2 + $0x48] sm:$0xff]
    %v267 = vld [vmem:[#allocation2 + $0x50] sm:$0xff]
    %v268 = vld [vmem:[#allocation2 + $0x58] sm:$0xff]
    %v269 = vld [vmem:[#allocation2 + $0x60] sm:$0xff]
    %v270 = vld [vmem:[#allocation2 + $0x68] sm:$0xff]
    %v271 = vld [vmem:[#allocation2 + $0x70] sm:$0xff]
    %v272 = vld [vmem:[#allocation2 + $0x78] sm:$0xff]
    %v273 = vmul.f32 %v175, %v175
    %v274 = vmul.f32 %v180, %v180
    %v275 = vmul.f32 %v185, %v185
    %v276 = vmul.f32 %v190, %v190
    %v277 = vmul.f32 %v195, %v195
    %v278 = vmul.f32 %v200, %v200
    %v279 = vmul.f32 %v205, %v205
    %v280 = vmul.f32 %v210, %v210
    %v281 = vmul.f32 %v215, %v215
    %v282 = vmul.f32 %v220, %v220
    %v283 = vmul.f32 %v225, %v225
    %v284 = vmul.f32 %v230, %v230
    %v285 = vmul.f32 %v235, %v235
    %v286 = vmul.f32 %v240, %v240
    %v287 = vmul.f32 %v245, %v245
    %v288 = vmul.f32 %v250, %v250
    %v289 = vstv %s256
    %v290 = vmul.f32 %v289, %v273
    %v291 = vmul.f32 %v289, %v274
    %v292 = vmul.f32 %v289, %v275
    %v293 = vmul.f32 %v289, %v276
    %v294 = vmul.f32 %v289, %v277
    %v295 = vmul.f32 %v289, %v278
    %v296 = vmul.f32 %v289, %v279
    %v297 = vmul.f32 %v289, %v280
    %v298 = vmul.f32 %v289, %v281
    %v299 = vmul.f32 %v289, %v282
    %v300 = vmul.f32 %v289, %v283
    %v301 = vmul.f32 %v289, %v284
    %v302 = vmul.f32 %v289, %v285
    %v303 = vmul.f32 %v289, %v286
    %v304 = vmul.f32 %v289, %v287
    %v305 = vmul.f32 %v289, %v288
    %v306 = vadd.f32 %v257, %v290
    %v307 = vadd.f32 %v258, %v291
    %v308 = vadd.f32 %v259, %v292
    %v309 = vadd.f32 %v260, %v293
    %v310 = vadd.f32 %v261, %v294
    %v311 = vadd.f32 %v262, %v295
    %v312 = vadd.f32 %v263, %v296
    %v313 = vadd.f32 %v264, %v297
    %v314 = vadd.f32 %v265, %v298
    %v315 = vadd.f32 %v266, %v299
    %v316 = vadd.f32 %v267, %v300
    %v317 = vadd.f32 %v268, %v301
    %v318 = vadd.f32 %v269, %v302
    %v319 = vadd.f32 %v270, %v303
    %v320 = vadd.f32 %v271, %v304
    %v321 = vadd.f32 %v272, %v305
    %322 = vst [vmem:[#allocation2] sm:$0xff] %v306
    %323 = vst [vmem:[#allocation2 + $0x8] sm:$0xff] %v307
    %324 = vst [vmem:[#allocation2 + $0x10] sm:$0xff] %v308
    %325 = vst [vmem:[#allocation2 + $0x18] sm:$0xff] %v309
    %326 = vst [vmem:[#allocation2 + $0x20] sm:$0xff] %v310
    %327 = vst [vmem:[#allocation2 + $0x28] sm:$0xff] %v311
    %328 = vst [vmem:[#allocation2 + $0x30] sm:$0xff] %v312
    %329 = vst [vmem:[#allocation2 + $0x38] sm:$0xff] %v313
    %330 = vst [vmem:[#allocation2 + $0x40] sm:$0xff] %v314
    %331 = vst [vmem:[#allocation2 + $0x48] sm:$0xff] %v315
    %332 = vst [vmem:[#allocation2 + $0x50] sm:$0xff] %v316
    %333 = vst [vmem:[#allocation2 + $0x58] sm:$0xff] %v317
    %334 = vst [vmem:[#allocation2 + $0x60] sm:$0xff] %v318
    %335 = vst [vmem:[#allocation2 + $0x68] sm:$0xff] %v319
    %336 = vst [vmem:[#allocation2 + $0x70] sm:$0xff] %v320
    %337 = vst [vmem:[#allocation2 + $0x78] sm:$0xff] %v321
    // Predicated region
    $region22: #{tpu_custom_call.1} parent=1 // pred_check
      %p338 = pneg %p56
    $region23: #{tpu_custom_call.1} parent=1 // pred_check_branch
      %340 = sbr.rel (%p338) target = $region25
    $region24: #{tpu_custom_call.1} parent=1 // pred_region
      %v341 = vld [vmem:[#allocation2] sm:$0xff]
      %v342 = vld [vmem:[#allocation2 + $0x8] sm:$0xff]
      %v343 = vld [vmem:[#allocation2 + $0x10] sm:$0xff]
      %v344 = vld [vmem:[#allocation2 + $0x18] sm:$0xff]
      %v345 = vld [vmem:[#allocation2 + $0x20] sm:$0xff]
      %v346 = vld [vmem:[#allocation2 + $0x28] sm:$0xff]
      %v347 = vld [vmem:[#allocation2 + $0x30] sm:$0xff]
      %v348 = vld [vmem:[#allocation2 + $0x38] sm:$0xff]
      %v349 = vld [vmem:[#allocation2 + $0x40] sm:$0xff]
      %v350 = vld [vmem:[#allocation2 + $0x48] sm:$0xff]
      %v351 = vld [vmem:[#allocation2 + $0x50] sm:$0xff]
      %v352 = vld [vmem:[#allocation2 + $0x58] sm:$0xff]
      %v353 = vld [vmem:[#allocation2 + $0x60] sm:$0xff]
      %v354 = vld [vmem:[#allocation2 + $0x68] sm:$0xff]
      %v355 = vld [vmem:[#allocation2 + $0x70] sm:$0xff]
      %v356 = vld [vmem:[#allocation2 + $0x78] sm:$0xff]
      %v357 = vadd.f32 %v341, %v342
      %v358 = vadd.f32 %v357, %v343
      %v359 = vadd.f32 %v358, %v344
      %v360 = vadd.f32 %v359, %v345
      %v361 = vadd.f32 %v360, %v346
      %v362 = vadd.f32 %v361, %v347
      %v363 = vadd.f32 %v362, %v348
      %v364 = vadd.f32 %v363, %v349
      %v365 = vadd.f32 %v364, %v350
      %v366 = vadd.f32 %v365, %v351
      %v367 = vadd.f32 %v366, %v352
      %v368 = vadd.f32 %v367, %v353
      %v369 = vadd.f32 %v368, %v354
      %v370 = vadd.f32 %v369, %v355
      %v371 = vadd.f32 %v370, %v356
      %372 = vadd.xlane.f32.xlu0 %v371
      %v373 = vpop.xlane.xlu0 %372
      %v374 = vrot.slane %v373, 4
      %v375 = vadd.f32 %v373, %v374
      %v376 = vrot.slane %v375, 2
      %v377 = vadd.f32 %v375, %v376
      %v378 = vrot.slane %v377, 1
      %v379 = vadd.f32 %v377, %v378
      %s380 = vtos %v379
      %s381 = smul.f32 %s380, 0.125
      %s382 = scalar_lea.smem [#allocation11], 0
      %383 = sst [smem:[%s382]] %s381
    $region25: #{tpu_custom_call.1} parent=1 // pred_fallthru
      _
    // Predicated region
    $region26: #{tpu_custom_call.1} parent=1 // pred_check
      _
    $region27: #{tpu_custom_call.1} parent=1 // pred_check_branch
      %385 = sbr.rel (0) target = $region29
    $region28: #{tpu_custom_call.1} parent=1 // pred_region
      %s387 = ssub.s32 16, 16
      %388 = vsyncadd [#allocation8], %s387
      %391 = dma.smem_to_hbm [#allocation11], 16, %s4, [#allocation8]
    $region29: #{tpu_custom_call.1} parent=1 // pred_fallthru
      _
    // Predicated region
    $region30: #{tpu_custom_call.1} parent=1 // pred_check
      _
    $region31: #{tpu_custom_call.1} parent=1 // pred_check_branch
      %393 = sbr.rel (0) target = $region33
    $region32: #{tpu_custom_call.1} parent=1 // pred_region
      %394 = dma.done [#allocation8], 16
    $region33: #{tpu_custom_call.1} parent=1 // pred_fallthru
      _
    %395 = sfence
    %396 = vsyncpa [#allocation7], 1
    %397 = vsyncpa [#allocation10], 1
    %398 = vsyncpa [#allocation8], 1

</llo_original>
